<compile_context>
chip_gen: v7x
topology: tpu7x:2x2x1
jax: 0.10.0
libtpu: 0.0.40
codegen_flags: <defaults>
</compile_context>

<pallas_src>
import jax
import jax.numpy as jnp
from jax.experimental import pallas as pl
from jax.experimental.pallas import tpu as pltpu


def _round_up(x, m):
    return (x + m - 1) // m * m


def _pad2(x, rows, cols):
    r, c = x.shape
    if r == rows and c == cols:
        return x
    return jnp.pad(x, ((0, rows - r), (0, cols - c)))


def _chip_tuning():
    """Per-generation (row/contraction tile, vmem limit)."""
    kind = jax.devices()[0].device_kind.lower()
    if "v7" in kind:
        # v7x: 2x256^2 MXU but only 64 MiB VMEM/TC -> keep headroom.
        return 256, 48 * 1024 * 1024
    if "v5 lite" in kind or "v5e" in kind or "v5lite" in kind:
        # v5e: 4x128^2 MXU, 128 MiB VMEM -> 128-row tiles already fill the MXU.
        return 128, 96 * 1024 * 1024
    # v6e (default): 2x256^2 MXU, 128 MiB VMEM.
    return 256, 96 * 1024 * 1024


def _manager_fwd_kernel(g_ref, xw_ref, ba_ref, wh_ref, bh_ref, out_ref, acc_ref):
    """One (row-block i, contraction-block k) step of the fused Manager forward.

      acc[i] += g[i, k] @ xw[k]              (bf16 MXU operands, f32 accumulate)
      last k: h = relu(acc + b_arch);  out[i] = h @ W_all + b_all   (bf16 store)
    """
    k = pl.program_id(1)

    @pl.when(k == 0)
    def _():
        acc_ref[...] = jnp.zeros_like(acc_ref)

    # g arrives in f32 (no extra pad+cast HBM pass in the wrapper); the per-block
    # VPU cast to bf16 hides under this step's MXU / DMA.
    g_blk = g_ref[...].astype(jnp.bfloat16)
    acc_ref[...] += jnp.dot(g_blk, xw_ref[...],
                            preferred_element_type=jnp.float32)

    @pl.when(k == pl.num_programs(1) - 1)
    def _():
        h = jnp.maximum(acc_ref[...] + ba_ref[...], 0.0)        # bias + ReLU in f32
        logits = jnp.dot(h.astype(jnp.bfloat16), wh_ref[...],
                         preferred_element_type=jnp.float32) + bh_ref[...]
        out_ref[...] = logits.astype(out_ref.dtype)


@jax.jit
def manager_forward_all_tasks(g, features, w_arch, b_arch, w_heads, b_heads):
    """Logits for EVERY task in one kernel call: [N, T*C] (bf16).

    g        : [N, N]   dense (row-normalized) adjacency
    features : [N, F]   node features
    w_arch   : [F, H], b_arch: [1, H]        backbone GCN weights
    w_heads  : [T, H, C], b_heads: [T, 1, C] all per-task linear heads
    """
    N = g.shape[0]
    H = w_arch.shape[1]
    T, _, C = w_heads.shape

    TM, vmem_limit = _chip_tuning()       # row tile (MXU-sized per chip)
    TK = TM                               # contraction tile over g's columns
    NP = _round_up(max(N, TM), TM)        # padded node count (TM == TK divides NP)
    HP = _round_up(H, 128)                # padded hidden dim
    CP = _round_up(T * C, 128)            # padded lane-dense all-task logit width

    # Grid-invariant precompute, hoisted out of the kernel: xw = features @ W_arch
    # once in XLA (bf16 operands, f32 accumulate), then bf16 for the MXU stream.
    xw = jnp.dot(features.astype(jnp.bfloat16), w_arch.astype(jnp.bfloat16),
                 preferred_element_type=jnp.float32)
    xw_p = _pad2(xw, NP, HP).astype(jnp.bfloat16)

    # Fold every task head into one [H, T*C] matmul (task-major column blocks).
    w_all = jnp.transpose(w_heads, (1, 0, 2)).reshape(H, T * C)
    b_all = b_heads.reshape(1, T * C)

    g_p = _pad2(g, NP, NP)                              # stays f32; cast in-kernel
    ba_p = _pad2(b_arch, 1, HP).astype(jnp.float32)
    wh_p = _pad2(w_all, HP, CP).astype(jnp.bfloat16)
    bh_p = _pad2(b_all, 1, CP).astype(jnp.float32)

    flops = 2 * NP * NP * HP + 2 * NP * HP * CP
    bytes_accessed = (g_p.size * 4 + xw_p.size * 2 + wh_p.size * 2
                      + (ba_p.size + bh_p.size) * 4 + NP * CP * 2)

    out = pl.pallas_call(
        _manager_fwd_kernel,
        out_shape=jax.ShapeDtypeStruct((NP, CP), jnp.bfloat16),
        grid=(NP // TM, NP // TK),
        in_specs=[
            pl.BlockSpec((TM, TK), lambda i, k: (i, k)),   # g tile (streamed, f32)
            pl.BlockSpec((TK, HP), lambda i, k: (k, 0)),   # precomputed xw tile
            pl.BlockSpec((1, HP), lambda i, k: (0, 0)),    # b_arch (grid-invariant)
            pl.BlockSpec((HP, CP), lambda i, k: (0, 0)),   # all-task W (invariant)
            pl.BlockSpec((1, CP), lambda i, k: (0, 0)),    # all-task b (invariant)
        ],
        out_specs=pl.BlockSpec((TM, CP), lambda i, k: (i, 0)),
        scratch_shapes=[pltpu.VMEM((TM, HP), jnp.float32)],   # f32 accumulator
        compiler_params=pltpu.CompilerParams(
            dimension_semantics=("parallel", "arbitrary"),    # rows x reduction
            vmem_limit_bytes=vmem_limit,
        ),
        cost_estimate=pl.CostEstimate(flops=flops, transcendentals=0,
                                      bytes_accessed=bytes_accessed),
    )(g_p, xw_p, ba_p, wh_p, bh_p)

    # Mandatory slice: padded rows carry relu(b_arch)-derived nonzero logits.
    return out[:N, : T * C]


def manager_forward(g, features, task, w_arch, b_arch, w_heads, b_heads):
    """Matches Manager.forward(g, features, task): select one task's logits."""
    C = w_heads.shape[2]
    all_logits = manager_forward_all_tasks(g, features, w_arch, b_arch,
                                           w_heads, b_heads)
    return all_logits[:, task * C:(task + 1) * C]


def reference_forward_all_tasks(g, features, w_arch, b_arch, w_heads, b_heads):
    """Pure-JAX reference emulating the kernel's bf16-operand / f32-accumulate path."""
    bf = lambda x: x.astype(jnp.bfloat16).astype(jnp.float32)
    T, H, C = w_heads.shape
    w_all = jnp.transpose(w_heads, (1, 0, 2)).reshape(H, T * C)
    b_all = b_heads.reshape(1, T * C)
    xw = bf(features) @ bf(w_arch)
    h = jnp.maximum(bf(g) @ bf(xw) + b_arch, 0.0)
    return bf(h) @ bf(w_all) + b_all


if __name__ == "__main__":
    key = jax.random.PRNGKey(0)
    k_g, k_f, k_wa, k_ba, k_wh, k_bh = jax.random.split(key, 6)

    # Small shapes consistent with the module:
    #   N nodes, F raw feature dim, in_feat (hidden) = H, taskcla -> per-task n_class.
    N, F, H = 16, 8, 32
    taskcla = [(0, 4, None), (1, 4, None), (2, 4, None)]  # 3 tasks, 4 classes each
    T = len(taskcla)
    task = 1
    C = taskcla[task][1]

    # Deterministic synthetic inputs / parameters.
    g = (jax.random.uniform(k_g, (N, N)) < 0.3).astype(jnp.float32)
    g = g + jnp.eye(N, dtype=jnp.float32)                    # self-loops
    g = g / jnp.maximum(g.sum(axis=1, keepdims=True), 1.0)   # row-normalized adjacency
    features = jax.random.normal(k_f, (N, F), dtype=jnp.float32)

    # Backbone (arch) parameters.
    w_arch = jax.random.normal(k_wa, (F, H), dtype=jnp.float32) * 0.1
    b_arch = jax.random.normal(k_ba, (1, H), dtype=jnp.float32) * 0.01

    # Per-task linear heads (nn.Linear(in_feat, n_class) for each task in taskcla).
    w_heads = jax.random.normal(k_wh, (T, H, C), dtype=jnp.float32) * 0.1
    b_heads = jax.random.normal(k_bh, (T, 1, C), dtype=jnp.float32) * 0.01

    logits = manager_forward(g, features, task, w_arch, b_arch, w_heads, b_heads)
    logits = jax.block_until_ready(logits)
    assert logits.shape == (N, C), logits.shape

    ref_all = reference_forward_all_tasks(g, features, w_arch, b_arch,
                                          w_heads, b_heads)
    ref = ref_all[:, task * C:(task + 1) * C]
    # Kernel emits bf16 logits; allow one bf16 ulp + intermediate rounding slack.
    assert jnp.allclose(logits.astype(jnp.float32), ref, atol=5e-3, rtol=5e-2), \
        "mismatch vs reference"

    print("KERNEL_OK")
</pallas_src>

<mosaic_0001>
module attributes {stable_mosaic.version = 11 : i64} {
  func.func @_manager_fwd_kernel(%arg0: i32, %arg1: i32, %arg2: memref<256x256xf32, #tpu.memory_space<vmem>>, %arg3: memref<256x128xbf16, #tpu.memory_space<vmem>>, %arg4: memref<1x128xf32, #tpu.memory_space<vmem>>, %arg5: memref<128x128xbf16, #tpu.memory_space<vmem>>, %arg6: memref<1x128xf32, #tpu.memory_space<vmem>>, %arg7: memref<256x128xbf16, #tpu.memory_space<vmem>>, %arg8: memref<256x128xf32, #tpu.memory_space<vmem>>) attributes {dimension_semantics = [#tpu.dimension_semantics<parallel>, #tpu.dimension_semantics<arbitrary>], iteration_bounds = array<i64: 1, 1>, scalar_prefetch = 0 : i64, scratch_operands = 1 : i64, tpu.core_type = #tpu.core_type<tc>, window_params = [{transform_indices = @transform_0, window_bounds = array<i64: 256, 256>}, {transform_indices = @transform_1, window_bounds = array<i64: 256, 128>}, {pipeline_mode = #tpu.pipeline_mode<synchronous>, transform_indices = @transform_2, window_bounds = array<i64: 1, 128>}, {pipeline_mode = #tpu.pipeline_mode<synchronous>, transform_indices = @transform_3, window_bounds = array<i64: 128, 128>}, {pipeline_mode = #tpu.pipeline_mode<synchronous>, transform_indices = @transform_4, window_bounds = array<i64: 1, 128>}, {transform_indices = @transform_5, window_bounds = array<i64: 256, 128>}]} {
    %c0_i32 = arith.constant 0 : i32
    %0 = arith.cmpi eq, %arg1, %c0_i32 : i32
    %1 = arith.extui %0 : i1 to i32
    %c0_i32_0 = arith.constant 0 : i32
    %2 = arith.cmpi ne, %1, %c0_i32_0 : i32
    scf.if %2 {
      %cst_10 = arith.constant 0.000000e+00 : f32
      %13 = vector.broadcast %cst_10 : f32 to vector<256x128xf32>
      %c0_11 = arith.constant 0 : index
      %c0_12 = arith.constant 0 : index
      %14 = vector.load %arg8[%c0_11, %c0_12] : memref<256x128xf32, #tpu.memory_space<vmem>>, vector<256x128xf32>
      tpu.vector_store %arg8[%c0_11, %c0_12], %13 {strides = array<i32>} : memref<256x128xf32, #tpu.memory_space<vmem>>, vector<256x128xf32>,
    } else {
    }
    %c0 = arith.constant 0 : index
    %c0_1 = arith.constant 0 : index
    %3 = vector.load %arg2[%c0, %c0_1] : memref<256x256xf32, #tpu.memory_space<vmem>>, vector<256x256xf32>
    %4 = arith.truncf %3 : vector<256x256xf32> to vector<256x256xbf16>
    %c0_2 = arith.constant 0 : index
    %c0_3 = arith.constant 0 : index
    %5 = vector.load %arg8[%c0_2, %c0_3] : memref<256x128xf32, #tpu.memory_space<vmem>>, vector<256x128xf32>
    %c0_4 = arith.constant 0 : index
    %c0_5 = arith.constant 0 : index
    %6 = vector.load %arg3[%c0_4, %c0_5] : memref<256x128xbf16, #tpu.memory_space<vmem>>, vector<256x128xbf16>
    %cst = arith.constant dense<0.000000e+00> : vector<256x128xf32>
    %7 = tpu.matmul %4, %6, %cst {dimension_numbers = #tpu.dot_dimension_numbers<[1], [0], [0], [1], [0, 0, 1, 1], [], []>} : vector<256x256xbf16>, vector<256x128xbf16>, vector<256x128xf32> -> vector<256x128xf32>
    %8 = arith.addf %5, %7 : vector<256x128xf32>
    %c0_6 = arith.constant 0 : index
    %c0_7 = arith.constant 0 : index
    %9 = vector.load %arg8[%c0_6, %c0_7] : memref<256x128xf32, #tpu.memory_space<vmem>>, vector<256x128xf32>
    tpu.vector_store %arg8[%c0_6, %c0_7], %8 {strides = array<i32>} : memref<256x128xf32, #tpu.memory_space<vmem>>, vector<256x128xf32>,
    %c0_i32_8 = arith.constant 0 : i32
    %10 = arith.cmpi eq, %arg1, %c0_i32_8 : i32
    %11 = arith.extui %10 : i1 to i32
    %c0_i32_9 = arith.constant 0 : i32
    %12 = arith.cmpi ne, %11, %c0_i32_9 : i32
    scf.if %12 {
      %c0_10 = arith.constant 0 : index
      %c0_11 = arith.constant 0 : index
      %13 = vector.load %arg8[%c0_10, %c0_11] : memref<256x128xf32, #tpu.memory_space<vmem>>, vector<256x128xf32>
      %c0_12 = arith.constant 0 : index
      %c0_13 = arith.constant 0 : index
      %14 = vector.load %arg4[%c0_12, %c0_13] : memref<1x128xf32, #tpu.memory_space<vmem>>, vector<1x128xf32>
      %15 = vector.broadcast %14 : vector<1x128xf32> to vector<256x128xf32>
      %16 = arith.addf %13, %15 : vector<256x128xf32>
      %cst_14 = arith.constant 0.000000e+00 : f32
      %17 = vector.broadcast %cst_14 : f32 to vector<256x128xf32>
      %18 = arith.maximumf %16, %17 : vector<256x128xf32>
      %19 = arith.truncf %18 : vector<256x128xf32> to vector<256x128xbf16>
      %c0_15 = arith.constant 0 : index
      %c0_16 = arith.constant 0 : index
      %20 = vector.load %arg5[%c0_15, %c0_16] : memref<128x128xbf16, #tpu.memory_space<vmem>>, vector<128x128xbf16>
      %cst_17 = arith.constant dense<0.000000e+00> : vector<256x128xf32>
      %21 = tpu.matmul %19, %20, %cst_17 {dimension_numbers = #tpu.dot_dimension_numbers<[1], [0], [0], [1], [0, 0, 1, 1], [], []>} : vector<256x128xbf16>, vector<128x128xbf16>, vector<256x128xf32> -> vector<256x128xf32>
      %c0_18 = arith.constant 0 : index
      %c0_19 = arith.constant 0 : index
      %22 = vector.load %arg6[%c0_18, %c0_19] : memref<1x128xf32, #tpu.memory_space<vmem>>, vector<1x128xf32>
      %23 = vector.broadcast %22 : vector<1x128xf32> to vector<256x128xf32>
      %24 = arith.addf %21, %23 : vector<256x128xf32>
      %25 = arith.truncf %24 : vector<256x128xf32> to vector<256x128xbf16>
      %c0_20 = arith.constant 0 : index
      %c0_21 = arith.constant 0 : index
      %26 = vector.load %arg7[%c0_20, %c0_21] : memref<256x128xbf16, #tpu.memory_space<vmem>>, vector<256x128xbf16>
      tpu.vector_store %arg7[%c0_20, %c0_21], %25 {strides = array<i32>} : memref<256x128xbf16, #tpu.memory_space<vmem>>, vector<256x128xbf16>,
    } else {
    }
    return
  }
  func.func @transform_0(%arg0: i32, %arg1: i32) -> (i32, i32) {
    %c0_i32 = arith.constant 0 : i32
    return %arg0, %arg1 : i32, i32
  }
  func.func @transform_1(%arg0: i32, %arg1: i32) -> (i32, i32) {
    %c0_i32 = arith.constant 0 : i32
    %c0_i32_0 = arith.constant 0 : i32
    return %arg1, %c0_i32 : i32, i32
  }
  func.func @transform_2(%arg0: i32, %arg1: i32) -> (i32, i32) {
    %c0_i32 = arith.constant 0 : i32
    %c0_i32_0 = arith.constant 0 : i32
    %c0_i32_1 = arith.constant 0 : i32
    return %c0_i32, %c0_i32_0 : i32, i32
  }
  func.func @transform_3(%arg0: i32, %arg1: i32) -> (i32, i32) {
    %c0_i32 = arith.constant 0 : i32
    %c0_i32_0 = arith.constant 0 : i32
    %c0_i32_1 = arith.constant 0 : i32
    return %c0_i32, %c0_i32_0 : i32, i32
  }
  func.func @transform_4(%arg0: i32, %arg1: i32) -> (i32, i32) {
    %c0_i32 = arith.constant 0 : i32
    %c0_i32_0 = arith.constant 0 : i32
    %c0_i32_1 = arith.constant 0 : i32
    return %c0_i32, %c0_i32_0 : i32, i32
  }
  func.func @transform_5(%arg0: i32, %arg1: i32) -> (i32, i32) {
    %c0_i32 = arith.constant 0 : i32
    %c0_i32_0 = arith.constant 0 : i32
    return %arg0, %c0_i32 : i32, i32
  }
}

</mosaic_0001>

<llo_original>
// kernel: manager_forward_all_tasks.1
$region0: #{manager_forward_all_tasks.1}
  #allocation0 [shape = 'u32[]', space=smem, size = 0x4, offset = 0x4, fixed_abs, tag = 'smem constant byte address 0x4 - core index']
  #allocation1 [shape = 'u32[144,128]{1,0:T(1,128)}', space=vmem, size = 0x12000, scoped, tag = 'internal scratch']
  #allocation2 [shape = 'f32[256,128]{1,0:T(8,128)}', space=vmem, size = 0x20000, scoped, tag = 'scratch operand']
  %s0 = inlined_call_operand.hbm [shape: f32[256,256], index: 0, kind: input, shape index: {}]
  %s1 = inlined_call_operand.hbm [shape: bf16[256,128], index: 1, kind: input, shape index: {}]
  %s2 = inlined_call_operand.hbm [shape: f32[1,128], index: 2, kind: input, shape index: {}]
  %s3 = inlined_call_operand.hbm [shape: bf16[128,128], index: 3, kind: input, shape index: {}]
  %s4 = inlined_call_operand.hbm [shape: f32[1,128], index: 4, kind: input, shape index: {}]
  %s5 = inlined_call_operand.hbm [shape: bf16[256,128], index: 5, kind: output, shape index: {}]
  %s6 = sld [smem:[#allocation0]]
  $region58: #{manager_forward_all_tasks.1} parent=0
    _
  %s8 = ssub.s32 1, %s6
  %s9 = scalar_select 0, %s8, %s6
  $region1: #{manager_forward_all_tasks.1} parent=0
    #allocation3 [shape = 'u8[262144]{0}', space=vmem, size = 0x40000, scoped, tag = 'input window, operand 0, single buffered']
    #allocation4 [shape = 's32[1]{0}', space=sflag, size = 0x4, scoped, tag = 'scoped memory for manager_forward_all_tasks.1']
    #allocation5 [shape = 's32[1]{0}', space=sflag, size = 0x4, scoped, tag = 'scoped memory for manager_forward_all_tasks.1']
    #allocation6 [shape = 'u8[65536]{0}', space=vmem, size = 0x10000, scoped, tag = 'input window, operand 1, single buffered']
    #allocation7 [shape = 's32[1]{0}', space=sflag, size = 0x4, scoped, tag = 'scoped memory for manager_forward_all_tasks.1']
    #allocation8 [shape = 'u8[512]{0}', space=vmem, size = 0x400, scoped, tag = 'input window, operand 2, single buffered']
    #allocation9 [shape = 'u8[32768]{0}', space=vmem, size = 0x8000, scoped, tag = 'input window, operand 3, single buffered']
    #allocation10 [shape = 's32[1]{0}', space=sflag, size = 0x4, scoped, tag = 'scoped memory for manager_forward_all_tasks.1']
    #allocation11 [shape = 'u8[512]{0}', space=vmem, size = 0x400, scoped, tag = 'input window, operand 4, single buffered']
    #allocation12 [shape = 'u8[65536]{0}', space=vmem, size = 0x10000, scoped, tag = 'output window, operand 0, single buffered']
    %10 = vsyncpa [#allocation4], 0
    %11 = vsyncpa [#allocation7], 0
    %12 = vsyncpa [#allocation10], 0
    %13 = vsyncpa [#allocation5], 0
    // Predicated region
    $region2: #{manager_forward_all_tasks.1} parent=1 // pred_check
      _
    $region3: #{manager_forward_all_tasks.1} parent=1 // pred_check_branch
      %15 = sbr.rel (0) target = $region5
    $region4: #{manager_forward_all_tasks.1} parent=1 // pred_region
      %s17 = ssub.s32 8192, 8192
      %18 = vsyncadd [#allocation4], %s17
      %s19 = sshll.u32 [#allocation3], 4
      %s20 = int_to_ptr.vmem [resolvable:$true] %s19
      %25 = dma.hbm_to_vmem [thread:$0]  %s0, 8192, %s20, [#allocation4], 256, 256, 16
    $region5: #{manager_forward_all_tasks.1} parent=1 // pred_fallthru
      _
    // Predicated region
    $region6: #{manager_forward_all_tasks.1} parent=1 // pred_check
      _
    $region7: #{manager_forward_all_tasks.1} parent=1 // pred_check_branch
      %27 = sbr.rel (0) target = $region9
    $region8: #{manager_forward_all_tasks.1} parent=1 // pred_region
      %s29 = ssub.s32 2048, 2048
      %30 = vsyncadd [#allocation7], %s29
      %s31 = sshll.u32 [#allocation6], 4
      %s32 = int_to_ptr.vmem [resolvable:$true] %s31
      %37 = dma.hbm_to_vmem [thread:$0]  %s1, 2048, %s32, [#allocation7], 64, 64, 4
    $region9: #{manager_forward_all_tasks.1} parent=1 // pred_fallthru
      _
    // Predicated region
    $region10: #{manager_forward_all_tasks.1} parent=1 // pred_check
      _
    $region11: #{manager_forward_all_tasks.1} parent=1 // pred_check_branch
      %39 = sbr.rel (0) target = $region13
    $region12: #{manager_forward_all_tasks.1} parent=1 // pred_region
      %s41 = ssub.s32 16, 16
      %42 = vsyncadd [#allocation7], %s41
      %s44 = sshll.u32 [#allocation8], 4
      %s45 = int_to_ptr.vmem [resolvable:$true] %s44
      %47 = dma.hbm_to_vmem [thread:$0]  %s2, 16, %s45, [#allocation7]
    $region13: #{manager_forward_all_tasks.1} parent=1 // pred_fallthru
      _
    // Predicated region
    $region14: #{manager_forward_all_tasks.1} parent=1 // pred_check
      _
    $region15: #{manager_forward_all_tasks.1} parent=1 // pred_check_branch
      %49 = sbr.rel (0) target = $region17
    $region16: #{manager_forward_all_tasks.1} parent=1 // pred_region
      %s51 = ssub.s32 1024, 1024
      %52 = vsyncadd [#allocation10], %s51
      %s53 = sshll.u32 [#allocation9], 4
      %s54 = int_to_ptr.vmem [resolvable:$true] %s53
      %59 = dma.hbm_to_vmem [thread:$0]  %s3, 1024, %s54, [#allocation10], 64, 64, 4
    $region17: #{manager_forward_all_tasks.1} parent=1 // pred_fallthru
      _
    // Predicated region
    $region18: #{manager_forward_all_tasks.1} parent=1 // pred_check
      _
    $region19: #{manager_forward_all_tasks.1} parent=1 // pred_check_branch
      %61 = sbr.rel (0) target = $region21
    $region20: #{manager_forward_all_tasks.1} parent=1 // pred_region
      %s63 = ssub.s32 16, 16
      %64 = vsyncadd [#allocation10], %s63
      %s66 = sshll.u32 [#allocation11], 4
      %s67 = int_to_ptr.vmem [resolvable:$true] %s66
      %69 = dma.hbm_to_vmem [thread:$0]  %s4, 16, %s67, [#allocation10]
    $region21: #{manager_forward_all_tasks.1} parent=1 // pred_fallthru
      _
    // Predicated region
    $region22: #{manager_forward_all_tasks.1} parent=1 // pred_check
      _
    $region23: #{manager_forward_all_tasks.1} parent=1 // pred_check_branch
      %71 = sbr.rel (0) target = $region25
    $region24: #{manager_forward_all_tasks.1} parent=1 // pred_region
      %72 = dma.done [#allocation4], 8192
    $region25: #{manager_forward_all_tasks.1} parent=1 // pred_fallthru
      _
    // Predicated region
    $region26: #{manager_forward_all_tasks.1} parent=1 // pred_check
      _
    $region27: #{manager_forward_all_tasks.1} parent=1 // pred_check_branch
      %74 = sbr.rel (0) target = $region29
    $region28: #{manager_forward_all_tasks.1} parent=1 // pred_region
      %75 = dma.done [#allocation7], 2048
    $region29: #{manager_forward_all_tasks.1} parent=1 // pred_fallthru
      _
    // Predicated region
    $region30: #{manager_forward_all_tasks.1} parent=1 // pred_check
      _
    $region31: #{manager_forward_all_tasks.1} parent=1 // pred_check_branch
      %77 = sbr.rel (0) target = $region33
    $region32: #{manager_forward_all_tasks.1} parent=1 // pred_region
      %78 = dma.done [#allocation7], 16
    $region33: #{manager_forward_all_tasks.1} parent=1 // pred_fallthru
      _
    // Predicated region
    $region34: #{manager_forward_all_tasks.1} parent=1 // pred_check
      _
    $region35: #{manager_forward_all_tasks.1} parent=1 // pred_check_branch
      %80 = sbr.rel (0) target = $region37
    $region36: #{manager_forward_all_tasks.1} parent=1 // pred_region
      %81 = dma.done [#allocation10], 1024
    $region37: #{manager_forward_all_tasks.1} parent=1 // pred_fallthru
      _
    // Predicated region
    $region38: #{manager_forward_all_tasks.1} parent=1 // pred_check
      _
    $region39: #{manager_forward_all_tasks.1} parent=1 // pred_check_branch
      %83 = sbr.rel (0) target = $region41
    $region40: #{manager_forward_all_tasks.1} parent=1 // pred_region
      %84 = dma.done [#allocation10], 16
    $region41: #{manager_forward_all_tasks.1} parent=1 // pred_fallthru
      _
    %p86 = scmp.eq.s32.totalorder 0, 0
    // Predicated region
    $region42: #{manager_forward_all_tasks.1} parent=1 // pred_check
      %p87 = pneg %p86
    $region43: #{manager_forward_all_tasks.1} parent=1 // pred_check_branch
      %89 = sbr.rel (%p87) target = $region45
    $region44: #{manager_forward_all_tasks.1} parent=1 // pred_region
      %90 = vst [vmem:[#allocation2] sm:$0xff] 0.0
      %91 = vst [vmem:[#allocation2 + $0x8] sm:$0xff] 0.0
      %92 = vst [vmem:[#allocation2 + $0x10] sm:$0xff] 0.0
      %93 = vst [vmem:[#allocation2 + $0x18] sm:$0xff] 0.0
      %94 = vst [vmem:[#allocation2 + $0x20] sm:$0xff] 0.0
      %95 = vst [vmem:[#allocation2 + $0x28] sm:$0xff] 0.0
      %96 = vst [vmem:[#allocation2 + $0x30] sm:$0xff] 0.0
      %97 = vst [vmem:[#allocation2 + $0x38] sm:$0xff] 0.0
      %98 = vst [vmem:[#allocation2 + $0x40] sm:$0xff] 0.0
      %99 = vst [vmem:[#allocation2 + $0x48] sm:$0xff] 0.0
      %100 = vst [vmem:[#allocation2 + $0x50] sm:$0xff] 0.0
      %101 = vst [vmem:[#allocation2 + $0x58] sm:$0xff] 0.0
      %102 = vst [vmem:[#allocation2 + $0x60] sm:$0xff] 0.0
      %103 = vst [vmem:[#allocation2 + $0x68] sm:$0xff] 0.0
      %104 = vst [vmem:[#allocation2 + $0x70] sm:$0xff] 0.0
      %105 = vst [vmem:[#allocation2 + $0x78] sm:$0xff] 0.0
      %106 = vst [vmem:[#allocation2 + $0x80] sm:$0xff] 0.0
      %107 = vst [vmem:[#allocation2 + $0x88] sm:$0xff] 0.0
      %108 = vst [vmem:[#allocation2 + $0x90] sm:$0xff] 0.0
      %109 = vst [vmem:[#allocation2 + $0x98] sm:$0xff] 0.0
      %110 = vst [vmem:[#allocation2 + $0xa0] sm:$0xff] 0.0
      %111 = vst [vmem:[#allocation2 + $0xa8] sm:$0xff] 0.0
      %112 = vst [vmem:[#allocation2 + $0xb0] sm:$0xff] 0.0
      %113 = vst [vmem:[#allocation2 + $0xb8] sm:$0xff] 0.0
      %114 = vst [vmem:[#allocation2 + $0xc0] sm:$0xff] 0.0
      %115 = vst [vmem:[#allocation2 + $0xc8] sm:$0xff] 0.0
      %116 = vst [vmem:[#allocation2 + $0xd0] sm:$0xff] 0.0
      %117 = vst [vmem:[#allocation2 + $0xd8] sm:$0xff] 0.0
      %118 = vst [vmem:[#allocation2 + $0xe0] sm:$0xff] 0.0
      %119 = vst [vmem:[#allocation2 + $0xe8] sm:$0xff] 0.0
      %120 = vst [vmem:[#allocation2 + $0xf0] sm:$0xff] 0.0
      %121 = vst [vmem:[#allocation2 + $0xf8] sm:$0xff] 0.0
    $region45: #{manager_forward_all_tasks.1} parent=1 // pred_fallthru
      _
    %v122 = vld [vmem:[#allocation3] sm:$0xff]
    %v123 = vld [vmem:[#allocation3 + $0x8] sm:$0xff]
    %v124 = vld [vmem:[#allocation3 + $0x10] sm:$0xff]
    %v125 = vld [vmem:[#allocation3 + $0x18] sm:$0xff]
    %v126 = vld [vmem:[#allocation3 + $0x20] sm:$0xff]
    %v127 = vld [vmem:[#allocation3 + $0x28] sm:$0xff]
    %v128 = vld [vmem:[#allocation3 + $0x30] sm:$0xff]
    %v129 = vld [vmem:[#allocation3 + $0x38] sm:$0xff]
    %v130 = vld [vmem:[#allocation3 + $0x40] sm:$0xff]
    %v131 = vld [vmem:[#allocation3 + $0x48] sm:$0xff]
    %v132 = vld [vmem:[#allocation3 + $0x50] sm:$0xff]
    %v133 = vld [vmem:[#allocation3 + $0x58] sm:$0xff]
    %v134 = vld [vmem:[#allocation3 + $0x60] sm:$0xff]
    %v135 = vld [vmem:[#allocation3 + $0x68] sm:$0xff]
    %v136 = vld [vmem:[#allocation3 + $0x70] sm:$0xff]
    %v137 = vld [vmem:[#allocation3 + $0x78] sm:$0xff]
    %v138 = vld [vmem:[#allocation3 + $0x80] sm:$0xff]
    %v139 = vld [vmem:[#allocation3 + $0x88] sm:$0xff]
    %v140 = vld [vmem:[#allocation3 + $0x90] sm:$0xff]
    %v141 = vld [vmem:[#allocation3 + $0x98] sm:$0xff]
    %v142 = vld [vmem:[#allocation3 + $0xa0] sm:$0xff]
    %v143 = vld [vmem:[#allocation3 + $0xa8] sm:$0xff]
    %v144 = vld [vmem:[#allocation3 + $0xb0] sm:$0xff]
    %v145 = vld [vmem:[#allocation3 + $0xb8] sm:$0xff]
    %v146 = vld [vmem:[#allocation3 + $0xc0] sm:$0xff]
    %v147 = vld [vmem:[#allocation3 + $0xc8] sm:$0xff]
    %v148 = vld [vmem:[#allocation3 + $0xd0] sm:$0xff]
    %v149 = vld [vmem:[#allocation3 + $0xd8] sm:$0xff]
    %v150 = vld [vmem:[#allocation3 + $0xe0] sm:$0xff]
    %v151 = vld [vmem:[#allocation3 + $0xe8] sm:$0xff]
    %v152 = vld [vmem:[#allocation3 + $0xf0] sm:$0xff]
    %v153 = vld [vmem:[#allocation3 + $0xf8] sm:$0xff]
    %v154 = vld [vmem:[#allocation3 + $0x100] sm:$0xff]
    %v155 = vld [vmem:[#allocation3 + $0x108] sm:$0xff]
    %v156 = vld [vmem:[#allocation3 + $0x110] sm:$0xff]
    %v157 = vld [vmem:[#allocation3 + $0x118] sm:$0xff]
    %v158 = vld [vmem:[#allocation3 + $0x120] sm:$0xff]
    %v159 = vld [vmem:[#allocation3 + $0x128] sm:$0xff]
    %v160 = vld [vmem:[#allocation3 + $0x130] sm:$0xff]
    %v161 = vld [vmem:[#allocation3 + $0x138] sm:$0xff]
    %v162 = vld [vmem:[#allocation3 + $0x140] sm:$0xff]
    %v163 = vld [vmem:[#allocation3 + $0x148] sm:$0xff]
    %v164 = vld [vmem:[#allocation3 + $0x150] sm:$0xff]
    %v165 = vld [vmem:[#allocation3 + $0x158] sm:$0xff]
    %v166 = vld [vmem:[#allocation3 + $0x160] sm:$0xff]
    %v167 = vld [vmem:[#allocation3 + $0x168] sm:$0xff]
    %v168 = vld [vmem:[#allocation3 + $0x170] sm:$0xff]
    %v169 = vld [vmem:[#allocation3 + $0x178] sm:$0xff]
    %v170 = vld [vmem:[#allocation3 + $0x180] sm:$0xff]
    %v171 = vld [vmem:[#allocation3 + $0x188] sm:$0xff]
    %v172 = vld [vmem:[#allocation3 + $0x190] sm:$0xff]
    %v173 = vld [vmem:[#allocation3 + $0x198] sm:$0xff]
    %v174 = vld [vmem:[#allocation3 + $0x1a0] sm:$0xff]
    %v175 = vld [vmem:[#allocation3 + $0x1a8] sm:$0xff]
    %v176 = vld [vmem:[#allocation3 + $0x1b0] sm:$0xff]
    %v177 = vld [vmem:[#allocation3 + $0x1b8] sm:$0xff]
    %v178 = vld [vmem:[#allocation3 + $0x1c0] sm:$0xff]
    %v179 = vld [vmem:[#allocation3 + $0x1c8] sm:$0xff]
    %v180 = vld [vmem:[#allocation3 + $0x1d0] sm:$0xff]
    %v181 = vld [vmem:[#allocation3 + $0x1d8] sm:$0xff]
    %v182 = vld [vmem:[#allocation3 + $0x1e0] sm:$0xff]
    %v183 = vld [vmem:[#allocation3 + $0x1e8] sm:$0xff]
    %v184 = vld [vmem:[#allocation3 + $0x1f0] sm:$0xff]
    %v185 = vld [vmem:[#allocation3 + $0x1f8] sm:$0xff]
    %v186 = vpack.c.bf16 %v124, %v122
    %v187 = vpack.c.bf16 %v125, %v123
    %v188 = vpack.c.bf16 %v128, %v126
    %v189 = vpack.c.bf16 %v129, %v127
    %v190 = vpack.c.bf16 %v132, %v130
    %v191 = vpack.c.bf16 %v133, %v131
    %v192 = vpack.c.bf16 %v136, %v134
    %v193 = vpack.c.bf16 %v137, %v135
    %v194 = vpack.c.bf16 %v140, %v138
    %v195 = vpack.c.bf16 %v141, %v139
    %v196 = vpack.c.bf16 %v144, %v142
    %v197 = vpack.c.bf16 %v145, %v143
    %v198 = vpack.c.bf16 %v148, %v146
    %v199 = vpack.c.bf16 %v149, %v147
    %v200 = vpack.c.bf16 %v152, %v150
    %v201 = vpack.c.bf16 %v153, %v151
    %v202 = vpack.c.bf16 %v156, %v154
    %v203 = vpack.c.bf16 %v157, %v155
    %v204 = vpack.c.bf16 %v160, %v158
    %v205 = vpack.c.bf16 %v161, %v159
    %v206 = vpack.c.bf16 %v164, %v162
    %v207 = vpack.c.bf16 %v165, %v163
    %v208 = vpack.c.bf16 %v168, %v166
    %v209 = vpack.c.bf16 %v169, %v167
    %v210 = vpack.c.bf16 %v172, %v170
    %v211 = vpack.c.bf16 %v173, %v171
    %v212 = vpack.c.bf16 %v176, %v174
    %v213 = vpack.c.bf16 %v177, %v175
    %v214 = vpack.c.bf16 %v180, %v178
    %v215 = vpack.c.bf16 %v181, %v179
    %v216 = vpack.c.bf16 %v184, %v182
    %v217 = vpack.c.bf16 %v185, %v183
    %v218 = vld [vmem:[#allocation2] sm:$0xff]
    %v219 = vld [vmem:[#allocation2 + $0x8] sm:$0xff]
    %v220 = vld [vmem:[#allocation2 + $0x10] sm:$0xff]
    %v221 = vld [vmem:[#allocation2 + $0x18] sm:$0xff]
    %v222 = vld [vmem:[#allocation2 + $0x20] sm:$0xff]
    %v223 = vld [vmem:[#allocation2 + $0x28] sm:$0xff]
    %v224 = vld [vmem:[#allocation2 + $0x30] sm:$0xff]
    %v225 = vld [vmem:[#allocation2 + $0x38] sm:$0xff]
    %v226 = vld [vmem:[#allocation2 + $0x40] sm:$0xff]
    %v227 = vld [vmem:[#allocation2 + $0x48] sm:$0xff]
    %v228 = vld [vmem:[#allocation2 + $0x50] sm:$0xff]
    %v229 = vld [vmem:[#allocation2 + $0x58] sm:$0xff]
    %v230 = vld [vmem:[#allocation2 + $0x60] sm:$0xff]
    %v231 = vld [vmem:[#allocation2 + $0x68] sm:$0xff]
    %v232 = vld [vmem:[#allocation2 + $0x70] sm:$0xff]
    %v233 = vld [vmem:[#allocation2 + $0x78] sm:$0xff]
    %v234 = vld [vmem:[#allocation2 + $0x80] sm:$0xff]
    %v235 = vld [vmem:[#allocation2 + $0x88] sm:$0xff]
    %v236 = vld [vmem:[#allocation2 + $0x90] sm:$0xff]
    %v237 = vld [vmem:[#allocation2 + $0x98] sm:$0xff]
    %v238 = vld [vmem:[#allocation2 + $0xa0] sm:$0xff]
    %v239 = vld [vmem:[#allocation2 + $0xa8] sm:$0xff]
    %v240 = vld [vmem:[#allocation2 + $0xb0] sm:$0xff]
    %v241 = vld [vmem:[#allocation2 + $0xb8] sm:$0xff]
    %v242 = vld [vmem:[#allocation2 + $0xc0] sm:$0xff]
    %v243 = vld [vmem:[#allocation2 + $0xc8] sm:$0xff]
    %v244 = vld [vmem:[#allocation2 + $0xd0] sm:$0xff]
    %v245 = vld [vmem:[#allocation2 + $0xd8] sm:$0xff]
    %v246 = vld [vmem:[#allocation2 + $0xe0] sm:$0xff]
    %v247 = vld [vmem:[#allocation2 + $0xe8] sm:$0xff]
    %v248 = vld [vmem:[#allocation2 + $0xf0] sm:$0xff]
    %v249 = vld [vmem:[#allocation2 + $0xf8] sm:$0xff]
    %v250 = vld [vmem:[#allocation6] sm:$0xf]
    %v251 = vld [vmem:[#allocation6 + $0x4] sm:$0xf]
    %v252 = vld [vmem:[#allocation6 + $0x8] sm:$0xf]
    %v253 = vld [vmem:[#allocation6 + $0xc] sm:$0xf]
    %v254 = vld [vmem:[#allocation6 + $0x10] sm:$0xf]
    %v255 = vld [vmem:[#allocation6 + $0x14] sm:$0xf]
    %v256 = vld [vmem:[#allocation6 + $0x18] sm:$0xf]
    %v257 = vld [vmem:[#allocation6 + $0x1c] sm:$0xf]
    %v258 = vld [vmem:[#allocation6 + $0x20] sm:$0xf]
    %v259 = vld [vmem:[#allocation6 + $0x24] sm:$0xf]
    %v260 = vld [vmem:[#allocation6 + $0x28] sm:$0xf]
    %v261 = vld [vmem:[#allocation6 + $0x2c] sm:$0xf]
    %v262 = vld [vmem:[#allocation6 + $0x30] sm:$0xf]
    %v263 = vld [vmem:[#allocation6 + $0x34] sm:$0xf]
    %v264 = vld [vmem:[#allocation6 + $0x38] sm:$0xf]
    %v265 = vld [vmem:[#allocation6 + $0x3c] sm:$0xf]
    %v266 = vld [vmem:[#allocation6 + $0x40] sm:$0xf]
    %v267 = vld [vmem:[#allocation6 + $0x44] sm:$0xf]
    %v268 = vld [vmem:[#allocation6 + $0x48] sm:$0xf]
    %v269 = vld [vmem:[#allocation6 + $0x4c] sm:$0xf]
    %v270 = vld [vmem:[#allocation6 + $0x50] sm:$0xf]
    %v271 = vld [vmem:[#allocation6 + $0x54] sm:$0xf]
    %v272 = vld [vmem:[#allocation6 + $0x58] sm:$0xf]
    %v273 = vld [vmem:[#allocation6 + $0x5c] sm:$0xf]
    %v274 = vld [vmem:[#allocation6 + $0x60] sm:$0xf]
    %v275 = vld [vmem:[#allocation6 + $0x64] sm:$0xf]
    %v276 = vld [vmem:[#allocation6 + $0x68] sm:$0xf]
    %v277 = vld [vmem:[#allocation6 + $0x6c] sm:$0xf]
    %v278 = vld [vmem:[#allocation6 + $0x70] sm:$0xf]
    %v279 = vld [vmem:[#allocation6 + $0x74] sm:$0xf]
    %v280 = vld [vmem:[#allocation6 + $0x78] sm:$0xf]
    %v281 = vld [vmem:[#allocation6 + $0x7c] sm:$0xf]
    %v314 = vunpack.c.l.b16 %v250
    %v315 = vunpack.c.l.b16 %v251
    %v316 = vunpack.c.l.b16 %v252
    %v317 = vunpack.c.l.b16 %v253
    %v318 = vunpack.c.l.b16 %v254
    %v319 = vunpack.c.l.b16 %v255
    %v320 = vunpack.c.l.b16 %v256
    %v321 = vunpack.c.l.b16 %v257
    %v322 = vunpack.c.l.b16 %v258
    %v323 = vunpack.c.l.b16 %v259
    %v324 = vunpack.c.l.b16 %v260
    %v325 = vunpack.c.l.b16 %v261
    %v326 = vunpack.c.l.b16 %v262
    %v327 = vunpack.c.l.b16 %v263
    %v328 = vunpack.c.l.b16 %v264
    %v329 = vunpack.c.l.b16 %v265
    %v330 = vunpack.c.l.b16 %v266
    %v331 = vunpack.c.l.b16 %v267
    %v332 = vunpack.c.l.b16 %v268
    %v333 = vunpack.c.l.b16 %v269
    %v334 = vunpack.c.l.b16 %v270
    %v335 = vunpack.c.l.b16 %v271
    %v336 = vunpack.c.l.b16 %v272
    %v337 = vunpack.c.l.b16 %v273
    %v338 = vunpack.c.l.b16 %v274
    %v339 = vunpack.c.l.b16 %v275
    %v340 = vunpack.c.l.b16 %v276
    %v341 = vunpack.c.l.b16 %v277
    %v342 = vunpack.c.l.b16 %v278
    %v343 = vunpack.c.l.b16 %v279
    %v344 = vunpack.c.l.b16 %v280
    %v345 = vunpack.c.l.b16 %v281
    %v346 = vpack.c.b16 %v315, %v314
    %v347 = vpack.c.b16 %v317, %v316
    %v348 = vpack.c.b16 %v319, %v318
    %v349 = vpack.c.b16 %v321, %v320
    %v350 = vpack.c.b16 %v323, %v322
    %v351 = vpack.c.b16 %v325, %v324
    %v352 = vpack.c.b16 %v327, %v326
    %v353 = vpack.c.b16 %v329, %v328
    %v354 = vpack.c.b16 %v331, %v330
    %v355 = vpack.c.b16 %v333, %v332
    %v356 = vpack.c.b16 %v335, %v334
    %v357 = vpack.c.b16 %v337, %v336
    %v358 = vpack.c.b16 %v339, %v338
    %v359 = vpack.c.b16 %v341, %v340
    %v360 = vpack.c.b16 %v343, %v342
    %v361 = vpack.c.b16 %v345, %v344
    %378 = vmatprep.subr.bf16.mxu0 0
    %379 = vmatpush1.bf16.msra.mxu0 %v346
    %380 = vmatprep.subr.bf16.mxu0 0
    %381 = vmatpush1.bf16.msra.mxu0 %v347
    %382 = vmatprep.subr.bf16.mxu0 0
    %383 = vmatpush1.bf16.msra.mxu0 %v348
    %384 = vmatprep.subr.bf16.mxu0 0
    %385 = vmatpush1.bf16.msra.mxu0 %v349
    %386 = vmatprep.subr.bf16.mxu0 0
    %387 = vmatpush1.bf16.msra.mxu0 %v350
    %388 = vmatprep.subr.bf16.mxu0 0
    %389 = vmatpush1.bf16.msra.mxu0 %v351
    %390 = vmatprep.subr.bf16.mxu0 0
    %391 = vmatpush1.bf16.msra.mxu0 %v352
    %392 = vmatprep.subr.bf16.mxu0 0
    %393 = vmatpush1.bf16.msra.mxu0 %v353
    %394 = vmatprep.subr.bf16.mxu0 0
    %395 = vmatpush1.bf16.msra.mxu0 %v354
    %396 = vmatprep.subr.bf16.mxu0 0
    %397 = vmatpush1.bf16.msra.mxu0 %v355
    %398 = vmatprep.subr.bf16.mxu0 0
    %399 = vmatpush1.bf16.msra.mxu0 %v356
    %400 = vmatprep.subr.bf16.mxu0 0
    %401 = vmatpush1.bf16.msra.mxu0 %v357
    %402 = vmatprep.subr.bf16.mxu0 0
    %403 = vmatpush1.bf16.msra.mxu0 %v358
    %404 = vmatprep.subr.bf16.mxu0 0
    %405 = vmatpush1.bf16.msra.mxu0 %v359
    %406 = vmatprep.subr.bf16.mxu0 0
    %407 = vmatpush1.bf16.msra.mxu0 %v360
    %408 = vmatprep.subr.bf16.mxu0 0
    %409 = vmatpush1.bf16.msra.mxu0 %v361
    %410 = vmatprep.mubr.bf16.mxu0 %v187
    %411 = vmatmul.mubr.bf16.gmra.mrb[0].mxu0 %v186
    %v412 = vpop.f32.mrb[0].mxu0
    %v413 = vadd.f32 0.0, %v412
    %v414 = vpop.f32.mrb[0].mxu0
    %v415 = vpop.f32.mrb[0].mxu0
    %v416 = vadd.f32 0.0, %v415
    %v417 = vpop.f32.mrb[0].mxu0
    %418 = vmatprep.mubr.bf16.mxu0 %v189
    %419 = vmatmul.mubr.bf16.gmra.mrb[0].mxu0 %v188
    %v420 = vpop.f32.mrb[0].mxu0
    %v421 = vadd.f32 0.0, %v420
    %v422 = vpop.f32.mrb[0].mxu0
    %v423 = vpop.f32.mrb[0].mxu0
    %v424 = vadd.f32 0.0, %v423
    %v425 = vpop.f32.mrb[0].mxu0
    %426 = vmatprep.mubr.bf16.mxu0 %v191
    %427 = vmatmul.mubr.bf16.gmra.mrb[0].mxu0 %v190
    %v428 = vpop.f32.mrb[0].mxu0
    %v429 = vadd.f32 0.0, %v428
    %v430 = vpop.f32.mrb[0].mxu0
    %v431 = vpop.f32.mrb[0].mxu0
    %v432 = vadd.f32 0.0, %v431
    %v433 = vpop.f32.mrb[0].mxu0
    %434 = vmatprep.mubr.bf16.mxu0 %v193
    %435 = vmatmul.mubr.bf16.gmra.mrb[0].mxu0 %v192
    %v436 = vpop.f32.mrb[0].mxu0
    %v437 = vadd.f32 0.0, %v436
    %v438 = vpop.f32.mrb[0].mxu0
    %v439 = vpop.f32.mrb[0].mxu0
    %v440 = vadd.f32 0.0, %v439
    %v441 = vpop.f32.mrb[0].mxu0
    %442 = vmatprep.mubr.bf16.mxu0 %v195
    %443 = vmatmul.mubr.bf16.gmra.mrb[0].mxu0 %v194
    %v444 = vpop.f32.mrb[0].mxu0
    %v445 = vadd.f32 0.0, %v444
    %v446 = vpop.f32.mrb[0].mxu0
    %v447 = vpop.f32.mrb[0].mxu0
    %v448 = vadd.f32 0.0, %v447
    %v449 = vpop.f32.mrb[0].mxu0
    %450 = vmatprep.mubr.bf16.mxu0 %v197
    %451 = vmatmul.mubr.bf16.gmra.mrb[0].mxu0 %v196
    %v452 = vpop.f32.mrb[0].mxu0
    %v453 = vadd.f32 0.0, %v452
    %v454 = vpop.f32.mrb[0].mxu0
    %v455 = vpop.f32.mrb[0].mxu0
    %v456 = vadd.f32 0.0, %v455
    %v457 = vpop.f32.mrb[0].mxu0
    %458 = vmatprep.mubr.bf16.mxu0 %v199
    %459 = vmatmul.mubr.bf16.gmra.mrb[0].mxu0 %v198
    %v460 = vpop.f32.mrb[0].mxu0
    %v461 = vadd.f32 0.0, %v460
    %v462 = vpop.f32.mrb[0].mxu0
    %v463 = vpop.f32.mrb[0].mxu0
    %v464 = vadd.f32 0.0, %v463
    %v465 = vpop.f32.mrb[0].mxu0
    %466 = vmatprep.mubr.bf16.mxu0 %v201
    %467 = vmatmul.mubr.bf16.gmra.mrb[0].mxu0 %v200
    %v468 = vpop.f32.mrb[0].mxu0
    %v469 = vadd.f32 0.0, %v468
    %v470 = vpop.f32.mrb[0].mxu0
    %v471 = vpop.f32.mrb[0].mxu0
    %v472 = vadd.f32 0.0, %v471
    %v473 = vpop.f32.mrb[0].mxu0
    %474 = vmatprep.mubr.bf16.mxu0 %v203
    %475 = vmatmul.mubr.bf16.gmra.mrb[0].mxu0 %v202
    %v476 = vpop.f32.mrb[0].mxu0
    %v477 = vadd.f32 0.0, %v476
    %v478 = vpop.f32.mrb[0].mxu0
    %v479 = vpop.f32.mrb[0].mxu0
    %v480 = vadd.f32 0.0, %v479
    %v481 = vpop.f32.mrb[0].mxu0
    %482 = vmatprep.mubr.bf16.mxu0 %v205
    %483 = vmatmul.mubr.bf16.gmra.mrb[0].mxu0 %v204
    %v484 = vpop.f32.mrb[0].mxu0
    %v485 = vadd.f32 0.0, %v484
    %v486 = vpop.f32.mrb[0].mxu0
    %v487 = vpop.f32.mrb[0].mxu0
    %v488 = vadd.f32 0.0, %v487
    %v489 = vpop.f32.mrb[0].mxu0
    %490 = vmatprep.mubr.bf16.mxu0 %v207
    %491 = vmatmul.mubr.bf16.gmra.mrb[0].mxu0 %v206
    %v492 = vpop.f32.mrb[0].mxu0
    %v493 = vadd.f32 0.0, %v492
    %v494 = vpop.f32.mrb[0].mxu0
    %v495 = vpop.f32.mrb[0].mxu0
    %v496 = vadd.f32 0.0, %v495
    %v497 = vpop.f32.mrb[0].mxu0
    %498 = vmatprep.mubr.bf16.mxu0 %v209
    %499 = vmatmul.mubr.bf16.gmra.mrb[0].mxu0 %v208
    %v500 = vpop.f32.mrb[0].mxu0
    %v501 = vadd.f32 0.0, %v500
    %v502 = vpop.f32.mrb[0].mxu0
    %v503 = vpop.f32.mrb[0].mxu0
    %v504 = vadd.f32 0.0, %v503
    %v505 = vpop.f32.mrb[0].mxu0
    %506 = vmatprep.mubr.bf16.mxu0 %v211
    %507 = vmatmul.mubr.bf16.gmra.mrb[0].mxu0 %v210
    %v508 = vpop.f32.mrb[0].mxu0
    %v509 = vadd.f32 0.0, %v508
    %v510 = vpop.f32.mrb[0].mxu0
    %v511 = vpop.f32.mrb[0].mxu0
    %v512 = vadd.f32 0.0, %v511
    %v513 = vpop.f32.mrb[0].mxu0
    %514 = vmatprep.mubr.bf16.mxu0 %v213
    %515 = vmatmul.mubr.bf16.gmra.mrb[0].mxu0 %v212
    %v516 = vpop.f32.mrb[0].mxu0
    %v517 = vadd.f32 0.0, %v516
    %v518 = vpop.f32.mrb[0].mxu0
    %v519 = vpop.f32.mrb[0].mxu0
    %v520 = vadd.f32 0.0, %v519
    %v521 = vpop.f32.mrb[0].mxu0
    %522 = vmatprep.mubr.bf16.mxu0 %v215
    %523 = vmatmul.mubr.bf16.gmra.mrb[0].mxu0 %v214
    %v524 = vpop.f32.mrb[0].mxu0
    %v525 = vadd.f32 0.0, %v524
    %v526 = vpop.f32.mrb[0].mxu0
    %v527 = vpop.f32.mrb[0].mxu0
    %v528 = vadd.f32 0.0, %v527
    %v529 = vpop.f32.mrb[0].mxu0
    %530 = vmatprep.mubr.bf16.mxu0 %v217
    %531 = vmatmul.mubr.bf16.gmra.mrb[0].mxu0 %v216
    %v532 = vpop.f32.mrb[0].mxu0
    %v533 = vadd.f32 0.0, %v532
    %v534 = vpop.f32.mrb[0].mxu0
    %v535 = vpop.f32.mrb[0].mxu0
    %v536 = vadd.f32 0.0, %v535
    %v537 = vpop.f32.mrb[0].mxu0
    %538 = vdwg.mxu0
    %v539 = vadd.f32 %v218, %v413
    %v540 = vadd.f32 %v219, %v416
    %v541 = vadd.f32 %v220, %v421
    %v542 = vadd.f32 %v221, %v424
    %v543 = vadd.f32 %v222, %v429
    %v544 = vadd.f32 %v223, %v432
    %v545 = vadd.f32 %v224, %v437
    %v546 = vadd.f32 %v225, %v440
    %v547 = vadd.f32 %v226, %v445
    %v548 = vadd.f32 %v227, %v448
    %v549 = vadd.f32 %v228, %v453
    %v550 = vadd.f32 %v229, %v456
    %v551 = vadd.f32 %v230, %v461
    %v552 = vadd.f32 %v231, %v464
    %v553 = vadd.f32 %v232, %v469
    %v554 = vadd.f32 %v233, %v472
    %v555 = vadd.f32 %v234, %v477
    %v556 = vadd.f32 %v235, %v480
    %v557 = vadd.f32 %v236, %v485
    %v558 = vadd.f32 %v237, %v488
    %v559 = vadd.f32 %v238, %v493
    %v560 = vadd.f32 %v239, %v496
    %v561 = vadd.f32 %v240, %v501
    %v562 = vadd.f32 %v241, %v504
    %v563 = vadd.f32 %v242, %v509
    %v564 = vadd.f32 %v243, %v512
    %v565 = vadd.f32 %v244, %v517
    %v566 = vadd.f32 %v245, %v520
    %v567 = vadd.f32 %v246, %v525
    %v568 = vadd.f32 %v247, %v528
    %v569 = vadd.f32 %v248, %v533
    %v570 = vadd.f32 %v249, %v536
    %571 = vst [vmem:[#allocation2] sm:$0xff] %v539
    %572 = vst [vmem:[#allocation2 + $0x8] sm:$0xff] %v540
    %573 = vst [vmem:[#allocation2 + $0x10] sm:$0xff] %v541
    %574 = vst [vmem:[#allocation2 + $0x18] sm:$0xff] %v542
    %575 = vst [vmem:[#allocation2 + $0x20] sm:$0xff] %v543
    %576 = vst [vmem:[#allocation2 + $0x28] sm:$0xff] %v544
    %577 = vst [vmem:[#allocation2 + $0x30] sm:$0xff] %v545
    %578 = vst [vmem:[#allocation2 + $0x38] sm:$0xff] %v546
    %579 = vst [vmem:[#allocation2 + $0x40] sm:$0xff] %v547
    %580 = vst [vmem:[#allocation2 + $0x48] sm:$0xff] %v548
    %581 = vst [vmem:[#allocation2 + $0x50] sm:$0xff] %v549
    %582 = vst [vmem:[#allocation2 + $0x58] sm:$0xff] %v550
    %583 = vst [vmem:[#allocation2 + $0x60] sm:$0xff] %v551
    %584 = vst [vmem:[#allocation2 + $0x68] sm:$0xff] %v552
    %585 = vst [vmem:[#allocation2 + $0x70] sm:$0xff] %v553
    %586 = vst [vmem:[#allocation2 + $0x78] sm:$0xff] %v554
    %587 = vst [vmem:[#allocation2 + $0x80] sm:$0xff] %v555
    %588 = vst [vmem:[#allocation2 + $0x88] sm:$0xff] %v556
    %589 = vst [vmem:[#allocation2 + $0x90] sm:$0xff] %v557
    %590 = vst [vmem:[#allocation2 + $0x98] sm:$0xff] %v558
    %591 = vst [vmem:[#allocation2 + $0xa0] sm:$0xff] %v559
    %592 = vst [vmem:[#allocation2 + $0xa8] sm:$0xff] %v560
    %593 = vst [vmem:[#allocation2 + $0xb0] sm:$0xff] %v561
    %594 = vst [vmem:[#allocation2 + $0xb8] sm:$0xff] %v562
    %595 = vst [vmem:[#allocation2 + $0xc0] sm:$0xff] %v563
    %596 = vst [vmem:[#allocation2 + $0xc8] sm:$0xff] %v564
    %597 = vst [vmem:[#allocation2 + $0xd0] sm:$0xff] %v565
    %598 = vst [vmem:[#allocation2 + $0xd8] sm:$0xff] %v566
    %599 = vst [vmem:[#allocation2 + $0xe0] sm:$0xff] %v567
    %600 = vst [vmem:[#allocation2 + $0xe8] sm:$0xff] %v568
    %601 = vst [vmem:[#allocation2 + $0xf0] sm:$0xff] %v569
    %602 = vst [vmem:[#allocation2 + $0xf8] sm:$0xff] %v570
    // Predicated region
    $region46: #{manager_forward_all_tasks.1} parent=1 // pred_check
      %p603 = pneg %p86
    $region47: #{manager_forward_all_tasks.1} parent=1 // pred_check_branch
      %605 = sbr.rel (%p603) target = $region49
    $region48: #{manager_forward_all_tasks.1} parent=1 // pred_region
      %v606 = vld [vmem:[#allocation2] sm:$0xff]
      %v607 = vld [vmem:[#allocation2 + $0x8] sm:$0xff]
      %v608 = vld [vmem:[#allocation2 + $0x10] sm:$0xff]
      %v609 = vld [vmem:[#allocation2 + $0x18] sm:$0xff]
      %v610 = vld [vmem:[#allocation2 + $0x20] sm:$0xff]
      %v611 = vld [vmem:[#allocation2 + $0x28] sm:$0xff]
      %v612 = vld [vmem:[#allocation2 + $0x30] sm:$0xff]
      %v613 = vld [vmem:[#allocation2 + $0x38] sm:$0xff]
      %v614 = vld [vmem:[#allocation2 + $0x40] sm:$0xff]
      %v615 = vld [vmem:[#allocation2 + $0x48] sm:$0xff]
      %v616 = vld [vmem:[#allocation2 + $0x50] sm:$0xff]
      %v617 = vld [vmem:[#allocation2 + $0x58] sm:$0xff]
      %v618 = vld [vmem:[#allocation2 + $0x60] sm:$0xff]
      %v619 = vld [vmem:[#allocation2 + $0x68] sm:$0xff]
      %v620 = vld [vmem:[#allocation2 + $0x70] sm:$0xff]
      %v621 = vld [vmem:[#allocation2 + $0x78] sm:$0xff]
      %v622 = vld [vmem:[#allocation2 + $0x80] sm:$0xff]
      %v623 = vld [vmem:[#allocation2 + $0x88] sm:$0xff]
      %v624 = vld [vmem:[#allocation2 + $0x90] sm:$0xff]
      %v625 = vld [vmem:[#allocation2 + $0x98] sm:$0xff]
      %v626 = vld [vmem:[#allocation2 + $0xa0] sm:$0xff]
      %v627 = vld [vmem:[#allocation2 + $0xa8] sm:$0xff]
      %v628 = vld [vmem:[#allocation2 + $0xb0] sm:$0xff]
      %v629 = vld [vmem:[#allocation2 + $0xb8] sm:$0xff]
      %v630 = vld [vmem:[#allocation2 + $0xc0] sm:$0xff]
      %v631 = vld [vmem:[#allocation2 + $0xc8] sm:$0xff]
      %v632 = vld [vmem:[#allocation2 + $0xd0] sm:$0xff]
      %v633 = vld [vmem:[#allocation2 + $0xd8] sm:$0xff]
      %v634 = vld [vmem:[#allocation2 + $0xe0] sm:$0xff]
      %v635 = vld [vmem:[#allocation2 + $0xe8] sm:$0xff]
      %v636 = vld [vmem:[#allocation2 + $0xf0] sm:$0xff]
      %v637 = vld [vmem:[#allocation2 + $0xf8] sm:$0xff]
      %v638 = vld [vmem:[#allocation8] sm:$0x1]
      %v640 = vlaneseq
      %v641 = vshrl.u32 %v640, 7
      %v642 = vsub.s32 0, %v641
      %v643 = vrot.slane %v638, %v642
      %v645 = vadd.f32 %v606, %v643
      %v646 = vadd.f32 %v607, %v643
      %v647 = vadd.f32 %v608, %v643
      %v648 = vadd.f32 %v609, %v643
      %v649 = vadd.f32 %v610, %v643
      %v650 = vadd.f32 %v611, %v643
      %v651 = vadd.f32 %v612, %v643
      %v652 = vadd.f32 %v613, %v643
      %v653 = vadd.f32 %v614, %v643
      %v654 = vadd.f32 %v615, %v643
      %v655 = vadd.f32 %v616, %v643
      %v656 = vadd.f32 %v617, %v643
      %v657 = vadd.f32 %v618, %v643
      %v658 = vadd.f32 %v619, %v643
      %v659 = vadd.f32 %v620, %v643
      %v660 = vadd.f32 %v621, %v643
      %v661 = vadd.f32 %v622, %v643
      %v662 = vadd.f32 %v623, %v643
      %v663 = vadd.f32 %v624, %v643
      %v664 = vadd.f32 %v625, %v643
      %v665 = vadd.f32 %v626, %v643
      %v666 = vadd.f32 %v627, %v643
      %v667 = vadd.f32 %v628, %v643
      %v668 = vadd.f32 %v629, %v643
      %v669 = vadd.f32 %v630, %v643
      %v670 = vadd.f32 %v631, %v643
      %v671 = vadd.f32 %v632, %v643
      %v672 = vadd.f32 %v633, %v643
      %v673 = vadd.f32 %v634, %v643
      %v674 = vadd.f32 %v635, %v643
      %v675 = vadd.f32 %v636, %v643
      %v676 = vadd.f32 %v637, %v643
      %v677 = vmax.f32 %v645, 0.0
      %v678 = vmax.f32 %v646, 0.0
      %v679 = vmax.f32 %v647, 0.0
      %v680 = vmax.f32 %v648, 0.0
      %v681 = vmax.f32 %v649, 0.0
      %v682 = vmax.f32 %v650, 0.0
      %v683 = vmax.f32 %v651, 0.0
      %v684 = vmax.f32 %v652, 0.0
      %v685 = vmax.f32 %v653, 0.0
      %v686 = vmax.f32 %v654, 0.0
      %v687 = vmax.f32 %v655, 0.0
      %v688 = vmax.f32 %v656, 0.0
      %v689 = vmax.f32 %v657, 0.0
      %v690 = vmax.f32 %v658, 0.0
      %v691 = vmax.f32 %v659, 0.0
      %v692 = vmax.f32 %v660, 0.0
      %v693 = vmax.f32 %v661, 0.0
      %v694 = vmax.f32 %v662, 0.0
      %v695 = vmax.f32 %v663, 0.0
      %v696 = vmax.f32 %v664, 0.0
      %v697 = vmax.f32 %v665, 0.0
      %v698 = vmax.f32 %v666, 0.0
      %v699 = vmax.f32 %v667, 0.0
      %v700 = vmax.f32 %v668, 0.0
      %v701 = vmax.f32 %v669, 0.0
      %v702 = vmax.f32 %v670, 0.0
      %v703 = vmax.f32 %v671, 0.0
      %v704 = vmax.f32 %v672, 0.0
      %v705 = vmax.f32 %v673, 0.0
      %v706 = vmax.f32 %v674, 0.0
      %v707 = vmax.f32 %v675, 0.0
      %v708 = vmax.f32 %v676, 0.0
      %v709 = vpack.c.bf16 %v678, %v677
      %v710 = vpack.c.bf16 %v680, %v679
      %v711 = vpack.c.bf16 %v682, %v681
      %v712 = vpack.c.bf16 %v684, %v683
      %v713 = vpack.c.bf16 %v686, %v685
      %v714 = vpack.c.bf16 %v688, %v687
      %v715 = vpack.c.bf16 %v690, %v689
      %v716 = vpack.c.bf16 %v692, %v691
      %v717 = vpack.c.bf16 %v694, %v693
      %v718 = vpack.c.bf16 %v696, %v695
      %v719 = vpack.c.bf16 %v698, %v697
      %v720 = vpack.c.bf16 %v700, %v699
      %v721 = vpack.c.bf16 %v702, %v701
      %v722 = vpack.c.bf16 %v704, %v703
      %v723 = vpack.c.bf16 %v706, %v705
      %v724 = vpack.c.bf16 %v708, %v707
      %v725 = vld [vmem:[#allocation9] sm:$0xf]
      %v726 = vld [vmem:[#allocation9 + $0x4] sm:$0xf]
      %v727 = vld [vmem:[#allocation9 + $0x8] sm:$0xf]
      %v728 = vld [vmem:[#allocation9 + $0xc] sm:$0xf]
      %v729 = vld [vmem:[#allocation9 + $0x10] sm:$0xf]
      %v730 = vld [vmem:[#allocation9 + $0x14] sm:$0xf]
      %v731 = vld [vmem:[#allocation9 + $0x18] sm:$0xf]
      %v732 = vld [vmem:[#allocation9 + $0x1c] sm:$0xf]
      %v733 = vld [vmem:[#allocation9 + $0x20] sm:$0xf]
      %v734 = vld [vmem:[#allocation9 + $0x24] sm:$0xf]
      %v735 = vld [vmem:[#allocation9 + $0x28] sm:$0xf]
      %v736 = vld [vmem:[#allocation9 + $0x2c] sm:$0xf]
      %v737 = vld [vmem:[#allocation9 + $0x30] sm:$0xf]
      %v738 = vld [vmem:[#allocation9 + $0x34] sm:$0xf]
      %v739 = vld [vmem:[#allocation9 + $0x38] sm:$0xf]
      %v740 = vld [vmem:[#allocation9 + $0x3c] sm:$0xf]
      %v741 = vld [vmem:[#allocation11] sm:$0x1]
      %v743 = vlaneseq
      %v744 = vshrl.u32 %v743, 7
      %v745 = vsub.s32 0, %v744
      %v746 = vrot.slane %v741, %v745
      %v764 = vunpack.c.l.b16 %v725
      %v765 = vunpack.c.l.b16 %v726
      %v766 = vunpack.c.l.b16 %v727
      %v767 = vunpack.c.l.b16 %v728
      %v768 = vunpack.c.l.b16 %v729
      %v769 = vunpack.c.l.b16 %v730
      %v770 = vunpack.c.l.b16 %v731
      %v771 = vunpack.c.l.b16 %v732
      %v772 = vunpack.c.l.b16 %v733
      %v773 = vunpack.c.l.b16 %v734
      %v774 = vunpack.c.l.b16 %v735
      %v775 = vunpack.c.l.b16 %v736
      %v776 = vunpack.c.l.b16 %v737
      %v777 = vunpack.c.l.b16 %v738
      %v778 = vunpack.c.l.b16 %v739
      %v779 = vunpack.c.l.b16 %v740
      %v780 = vpack.c.b16 %v765, %v764
      %v781 = vpack.c.b16 %v767, %v766
      %v782 = vpack.c.b16 %v769, %v768
      %v783 = vpack.c.b16 %v771, %v770
      %v784 = vpack.c.b16 %v773, %v772
      %v785 = vpack.c.b16 %v775, %v774
      %v786 = vpack.c.b16 %v777, %v776
      %v787 = vpack.c.b16 %v779, %v778
      %796 = vmatprep.subr.bf16.mxu0 0
      %797 = vmatpush1.bf16.msra.mxu0 %v780
      %798 = vmatprep.subr.bf16.mxu0 0
      %799 = vmatpush1.bf16.msra.mxu0 %v781
      %800 = vmatprep.subr.bf16.mxu0 0
      %801 = vmatpush1.bf16.msra.mxu0 %v782
      %802 = vmatprep.subr.bf16.mxu0 0
      %803 = vmatpush1.bf16.msra.mxu0 %v783
      %804 = vmatprep.subr.bf16.mxu0 0
      %805 = vmatpush1.bf16.msra.mxu0 %v784
      %806 = vmatprep.subr.bf16.mxu0 0
      %807 = vmatpush1.bf16.msra.mxu0 %v785
      %808 = vmatprep.subr.bf16.mxu0 0
      %809 = vmatpush1.bf16.msra.mxu0 %v786
      %810 = vmatprep.subr.bf16.mxu0 0
      %811 = vmatpush1.bf16.msra.mxu0 %v787
      %812 = vmatprep.subr.bf16.mxu0 0
      %813 = vmatpush1.bf16.msra.mxu0 0
      %814 = vmatprep.subr.bf16.mxu0 0
      %815 = vmatpush1.bf16.msra.mxu0 0
      %816 = vmatprep.subr.bf16.mxu0 0
      %817 = vmatpush1.bf16.msra.mxu0 0
      %818 = vmatprep.subr.bf16.mxu0 0
      %819 = vmatpush1.bf16.msra.mxu0 0
      %820 = vmatprep.subr.bf16.mxu0 0
      %821 = vmatpush1.bf16.msra.mxu0 0
      %822 = vmatprep.subr.bf16.mxu0 0
      %823 = vmatpush1.bf16.msra.mxu0 0
      %824 = vmatprep.subr.bf16.mxu0 0
      %825 = vmatpush1.bf16.msra.mxu0 0
      %826 = vmatprep.subr.bf16.mxu0 0
      %827 = vmatpush1.bf16.msra.mxu0 0
      %828 = vmatprep.mubr.bf16.mxu0 0
      %829 = vmatmul.mubr.bf16.gmra.mrb[0].mxu0 %v709
      %v830 = vpop.f32.mrb[0].mxu0
      %v831 = vadd.f32 %v746, %v830
      %v832 = vpop.f32.mrb[0].mxu0
      %v833 = vpop.f32.mrb[0].mxu0
      %v834 = vadd.f32 %v746, %v833
      %v835 = vpop.f32.mrb[0].mxu0
      %836 = vmatprep.mubr.bf16.mxu0 0
      %837 = vmatmul.mubr.bf16.gmra.mrb[0].mxu0 %v710
      %v838 = vpop.f32.mrb[0].mxu0
      %v839 = vadd.f32 %v746, %v838
      %v840 = vpop.f32.mrb[0].mxu0
      %v841 = vpop.f32.mrb[0].mxu0
      %v842 = vadd.f32 %v746, %v841
      %v843 = vpop.f32.mrb[0].mxu0
      %844 = vmatprep.mubr.bf16.mxu0 0
      %845 = vmatmul.mubr.bf16.gmra.mrb[0].mxu0 %v711
      %v846 = vpop.f32.mrb[0].mxu0
      %v847 = vadd.f32 %v746, %v846
      %v848 = vpop.f32.mrb[0].mxu0
      %v849 = vpop.f32.mrb[0].mxu0
      %v850 = vadd.f32 %v746, %v849
      %v851 = vpop.f32.mrb[0].mxu0
      %852 = vmatprep.mubr.bf16.mxu0 0
      %853 = vmatmul.mubr.bf16.gmra.mrb[0].mxu0 %v712
      %v854 = vpop.f32.mrb[0].mxu0
      %v855 = vadd.f32 %v746, %v854
      %v856 = vpop.f32.mrb[0].mxu0
      %v857 = vpop.f32.mrb[0].mxu0
      %v858 = vadd.f32 %v746, %v857
      %v859 = vpop.f32.mrb[0].mxu0
      %860 = vmatprep.mubr.bf16.mxu0 0
      %861 = vmatmul.mubr.bf16.gmra.mrb[0].mxu0 %v713
      %v862 = vpop.f32.mrb[0].mxu0
      %v863 = vadd.f32 %v746, %v862
      %v864 = vpop.f32.mrb[0].mxu0
      %v865 = vpop.f32.mrb[0].mxu0
      %v866 = vadd.f32 %v746, %v865
      %v867 = vpop.f32.mrb[0].mxu0
      %868 = vmatprep.mubr.bf16.mxu0 0
      %869 = vmatmul.mubr.bf16.gmra.mrb[0].mxu0 %v714
      %v870 = vpop.f32.mrb[0].mxu0
      %v871 = vadd.f32 %v746, %v870
      %v872 = vpop.f32.mrb[0].mxu0
      %v873 = vpop.f32.mrb[0].mxu0
      %v874 = vadd.f32 %v746, %v873
      %v875 = vpop.f32.mrb[0].mxu0
      %876 = vmatprep.mubr.bf16.mxu0 0
      %877 = vmatmul.mubr.bf16.gmra.mrb[0].mxu0 %v715
      %v878 = vpop.f32.mrb[0].mxu0
      %v879 = vadd.f32 %v746, %v878
      %v880 = vpop.f32.mrb[0].mxu0
      %v881 = vpop.f32.mrb[0].mxu0
      %v882 = vadd.f32 %v746, %v881
      %v883 = vpop.f32.mrb[0].mxu0
      %884 = vmatprep.mubr.bf16.mxu0 0
      %885 = vmatmul.mubr.bf16.gmra.mrb[0].mxu0 %v716
      %v886 = vpop.f32.mrb[0].mxu0
      %v887 = vadd.f32 %v746, %v886
      %v888 = vpop.f32.mrb[0].mxu0
      %v889 = vpop.f32.mrb[0].mxu0
      %v890 = vadd.f32 %v746, %v889
      %v891 = vpop.f32.mrb[0].mxu0
      %892 = vmatprep.mubr.bf16.mxu0 0
      %893 = vmatmul.mubr.bf16.gmra.mrb[0].mxu0 %v717
      %v894 = vpop.f32.mrb[0].mxu0
      %v895 = vadd.f32 %v746, %v894
      %v896 = vpop.f32.mrb[0].mxu0
      %v897 = vpop.f32.mrb[0].mxu0
      %v898 = vadd.f32 %v746, %v897
      %v899 = vpop.f32.mrb[0].mxu0
      %900 = vmatprep.mubr.bf16.mxu0 0
      %901 = vmatmul.mubr.bf16.gmra.mrb[0].mxu0 %v718
      %v902 = vpop.f32.mrb[0].mxu0
      %v903 = vadd.f32 %v746, %v902
      %v904 = vpop.f32.mrb[0].mxu0
      %v905 = vpop.f32.mrb[0].mxu0
      %v906 = vadd.f32 %v746, %v905
      %v907 = vpop.f32.mrb[0].mxu0
      %908 = vmatprep.mubr.bf16.mxu0 0
      %909 = vmatmul.mubr.bf16.gmra.mrb[0].mxu0 %v719
      %v910 = vpop.f32.mrb[0].mxu0
      %v911 = vadd.f32 %v746, %v910
      %v912 = vpop.f32.mrb[0].mxu0
      %v913 = vpop.f32.mrb[0].mxu0
      %v914 = vadd.f32 %v746, %v913
      %v915 = vpop.f32.mrb[0].mxu0
      %916 = vmatprep.mubr.bf16.mxu0 0
      %917 = vmatmul.mubr.bf16.gmra.mrb[0].mxu0 %v720
      %v918 = vpop.f32.mrb[0].mxu0
      %v919 = vadd.f32 %v746, %v918
      %v920 = vpop.f32.mrb[0].mxu0
      %v921 = vpop.f32.mrb[0].mxu0
      %v922 = vadd.f32 %v746, %v921
      %v923 = vpop.f32.mrb[0].mxu0
      %924 = vmatprep.mubr.bf16.mxu0 0
      %925 = vmatmul.mubr.bf16.gmra.mrb[0].mxu0 %v721
      %v926 = vpop.f32.mrb[0].mxu0
      %v927 = vadd.f32 %v746, %v926
      %v928 = vpop.f32.mrb[0].mxu0
      %v929 = vpop.f32.mrb[0].mxu0
      %v930 = vadd.f32 %v746, %v929
      %v931 = vpop.f32.mrb[0].mxu0
      %932 = vmatprep.mubr.bf16.mxu0 0
      %933 = vmatmul.mubr.bf16.gmra.mrb[0].mxu0 %v722
      %v934 = vpop.f32.mrb[0].mxu0
      %v935 = vadd.f32 %v746, %v934
      %v936 = vpop.f32.mrb[0].mxu0
      %v937 = vpop.f32.mrb[0].mxu0
      %v938 = vadd.f32 %v746, %v937
      %v939 = vpop.f32.mrb[0].mxu0
      %940 = vmatprep.mubr.bf16.mxu0 0
      %941 = vmatmul.mubr.bf16.gmra.mrb[0].mxu0 %v723
      %v942 = vpop.f32.mrb[0].mxu0
      %v943 = vadd.f32 %v746, %v942
      %v944 = vpop.f32.mrb[0].mxu0
      %v945 = vpop.f32.mrb[0].mxu0
      %v946 = vadd.f32 %v746, %v945
      %v947 = vpop.f32.mrb[0].mxu0
      %948 = vmatprep.mubr.bf16.mxu0 0
      %949 = vmatmul.mubr.bf16.gmra.mrb[0].mxu0 %v724
      %v950 = vpop.f32.mrb[0].mxu0
      %v951 = vadd.f32 %v746, %v950
      %v952 = vpop.f32.mrb[0].mxu0
      %v953 = vpop.f32.mrb[0].mxu0
      %v954 = vadd.f32 %v746, %v953
      %v955 = vpop.f32.mrb[0].mxu0
      %956 = vdwg.mxu0
      %v957 = vpack.c.bf16 %v834, %v831
      %v958 = vpack.c.bf16 %v842, %v839
      %v959 = vpack.c.bf16 %v850, %v847
      %v960 = vpack.c.bf16 %v858, %v855
      %v961 = vpack.c.bf16 %v866, %v863
      %v962 = vpack.c.bf16 %v874, %v871
      %v963 = vpack.c.bf16 %v882, %v879
      %v964 = vpack.c.bf16 %v890, %v887
      %v965 = vpack.c.bf16 %v898, %v895
      %v966 = vpack.c.bf16 %v906, %v903
      %v967 = vpack.c.bf16 %v914, %v911
      %v968 = vpack.c.bf16 %v922, %v919
      %v969 = vpack.c.bf16 %v930, %v927
      %v970 = vpack.c.bf16 %v938, %v935
      %v971 = vpack.c.bf16 %v946, %v943
      %v972 = vpack.c.bf16 %v954, %v951
      %v989 = vunpack.c.l.b16 %v957
      %v990 = vunpack.c.h.b16 %v957
      %v991 = vunpack.c.l.b16 %v958
      %v992 = vunpack.c.h.b16 %v958
      %v993 = vunpack.c.l.b16 %v959
      %v994 = vunpack.c.h.b16 %v959
      %v995 = vunpack.c.l.b16 %v960
      %v996 = vunpack.c.h.b16 %v960
      %v997 = vunpack.c.l.b16 %v961
      %v998 = vunpack.c.h.b16 %v961
      %v999 = vunpack.c.l.b16 %v962
      %v1000 = vunpack.c.h.b16 %v962
      %v1001 = vunpack.c.l.b16 %v963
      %v1002 = vunpack.c.h.b16 %v963
      %v1003 = vunpack.c.l.b16 %v964
      %v1004 = vunpack.c.h.b16 %v964
      %v1005 = vunpack.c.l.b16 %v965
      %v1006 = vunpack.c.h.b16 %v965
      %v1007 = vunpack.c.l.b16 %v966
      %v1008 = vunpack.c.h.b16 %v966
      %v1009 = vunpack.c.l.b16 %v967
      %v1010 = vunpack.c.h.b16 %v967
      %v1011 = vunpack.c.l.b16 %v968
      %v1012 = vunpack.c.h.b16 %v968
      %v1013 = vunpack.c.l.b16 %v969
      %v1014 = vunpack.c.h.b16 %v969
      %v1015 = vunpack.c.l.b16 %v970
      %v1016 = vunpack.c.h.b16 %v970
      %v1017 = vunpack.c.l.b16 %v971
      %v1018 = vunpack.c.h.b16 %v971
      %v1019 = vunpack.c.l.b16 %v972
      %v1020 = vunpack.c.h.b16 %v972
      %v1021 = vpack.c.b16 %v989, %v989
      %v1022 = vpack.c.b16 %v990, %v990
      %v1023 = vpack.c.b16 %v991, %v991
      %v1024 = vpack.c.b16 %v992, %v992
      %v1025 = vpack.c.b16 %v993, %v993
      %v1026 = vpack.c.b16 %v994, %v994
      %v1027 = vpack.c.b16 %v995, %v995
      %v1028 = vpack.c.b16 %v996, %v996
      %v1029 = vpack.c.b16 %v997, %v997
      %v1030 = vpack.c.b16 %v998, %v998
      %v1031 = vpack.c.b16 %v999, %v999
      %v1032 = vpack.c.b16 %v1000, %v1000
      %v1033 = vpack.c.b16 %v1001, %v1001
      %v1034 = vpack.c.b16 %v1002, %v1002
      %v1035 = vpack.c.b16 %v1003, %v1003
      %v1036 = vpack.c.b16 %v1004, %v1004
      %v1037 = vpack.c.b16 %v1005, %v1005
      %v1038 = vpack.c.b16 %v1006, %v1006
      %v1039 = vpack.c.b16 %v1007, %v1007
      %v1040 = vpack.c.b16 %v1008, %v1008
      %v1041 = vpack.c.b16 %v1009, %v1009
      %v1042 = vpack.c.b16 %v1010, %v1010
      %v1043 = vpack.c.b16 %v1011, %v1011
      %v1044 = vpack.c.b16 %v1012, %v1012
      %v1045 = vpack.c.b16 %v1013, %v1013
      %v1046 = vpack.c.b16 %v1014, %v1014
      %v1047 = vpack.c.b16 %v1015, %v1015
      %v1048 = vpack.c.b16 %v1016, %v1016
      %v1049 = vpack.c.b16 %v1017, %v1017
      %v1050 = vpack.c.b16 %v1018, %v1018
      %v1051 = vpack.c.b16 %v1019, %v1019
      %v1052 = vpack.c.b16 %v1020, %v1020
      %1085 = vst [vmem:[#allocation12] sm:$0xf] %v1021
      %1086 = vst [vmem:[#allocation12 + $0x4] sm:$0xf] %v1022
      %1087 = vst [vmem:[#allocation12 + $0x8] sm:$0xf] %v1023
      %1088 = vst [vmem:[#allocation12 + $0xc] sm:$0xf] %v1024
      %1089 = vst [vmem:[#allocation12 + $0x10] sm:$0xf] %v1025
      %1090 = vst [vmem:[#allocation12 + $0x14] sm:$0xf] %v1026
      %1091 = vst [vmem:[#allocation12 + $0x18] sm:$0xf] %v1027
      %1092 = vst [vmem:[#allocation12 + $0x1c] sm:$0xf] %v1028
      %1093 = vst [vmem:[#allocation12 + $0x20] sm:$0xf] %v1029
      %1094 = vst [vmem:[#allocation12 + $0x24] sm:$0xf] %v1030
      %1095 = vst [vmem:[#allocation12 + $0x28] sm:$0xf] %v1031
      %1096 = vst [vmem:[#allocation12 + $0x2c] sm:$0xf] %v1032
      %1097 = vst [vmem:[#allocation12 + $0x30] sm:$0xf] %v1033
      %1098 = vst [vmem:[#allocation12 + $0x34] sm:$0xf] %v1034
      %1099 = vst [vmem:[#allocation12 + $0x38] sm:$0xf] %v1035
      %1100 = vst [vmem:[#allocation12 + $0x3c] sm:$0xf] %v1036
      %1101 = vst [vmem:[#allocation12 + $0x40] sm:$0xf] %v1037
      %1102 = vst [vmem:[#allocation12 + $0x44] sm:$0xf] %v1038
      %1103 = vst [vmem:[#allocation12 + $0x48] sm:$0xf] %v1039
      %1104 = vst [vmem:[#allocation12 + $0x4c] sm:$0xf] %v1040
      %1105 = vst [vmem:[#allocation12 + $0x50] sm:$0xf] %v1041
      %1106 = vst [vmem:[#allocation12 + $0x54] sm:$0xf] %v1042
      %1107 = vst [vmem:[#allocation12 + $0x58] sm:$0xf] %v1043
      %1108 = vst [vmem:[#allocation12 + $0x5c] sm:$0xf] %v1044
      %1109 = vst [vmem:[#allocation12 + $0x60] sm:$0xf] %v1045
      %1110 = vst [vmem:[#allocation12 + $0x64] sm:$0xf] %v1046
      %1111 = vst [vmem:[#allocation12 + $0x68] sm:$0xf] %v1047
      %1112 = vst [vmem:[#allocation12 + $0x6c] sm:$0xf] %v1048
      %1113 = vst [vmem:[#allocation12 + $0x70] sm:$0xf] %v1049
      %1114 = vst [vmem:[#allocation12 + $0x74] sm:$0xf] %v1050
      %1115 = vst [vmem:[#allocation12 + $0x78] sm:$0xf] %v1051
      %1116 = vst [vmem:[#allocation12 + $0x7c] sm:$0xf] %v1052
    $region49: #{manager_forward_all_tasks.1} parent=1 // pred_fallthru
      _
    // Predicated region
    $region50: #{manager_forward_all_tasks.1} parent=1 // pred_check
      _
    $region51: #{manager_forward_all_tasks.1} parent=1 // pred_check_branch
      %1118 = sbr.rel (0) target = $region53
    $region52: #{manager_forward_all_tasks.1} parent=1 // pred_region
      %s1120 = ssub.s32 2048, 2048
      %1121 = vsyncadd [#allocation5], %s1120
      %s1122 = sshll.u32 [#allocation12], 4
      %s1123 = int_to_ptr.vmem [resolvable:$true] %s1122
      %1128 = dma.vmem_to_hbm [thread:$0]  %s1123, 2048, %s5, [#allocation5], 64, 64, 4
    $region53: #{manager_forward_all_tasks.1} parent=1 // pred_fallthru
      _
    // Predicated region
    $region54: #{manager_forward_all_tasks.1} parent=1 // pred_check
      _
    $region55: #{manager_forward_all_tasks.1} parent=1 // pred_check_branch
      %1130 = sbr.rel (0) target = $region57
    $region56: #{manager_forward_all_tasks.1} parent=1 // pred_region
      %1131 = dma.done [#allocation5], 2048
    $region57: #{manager_forward_all_tasks.1} parent=1 // pred_fallthru
      _
    %1132 = vsyncpa [#allocation4], 1
    %1133 = vsyncpa [#allocation7], 1
    %1134 = vsyncpa [#allocation10], 1
    %1135 = vsyncpa [#allocation5], 1

</llo_original>
